<compile_context>
chip_gen: v5e
topology: v5e:2x2
jax: 0.10.0
libtpu: 0.0.40
codegen_flags: <defaults>
</compile_context>

<pallas_src>
import functools
import math

import numpy as np

import jax
import jax.numpy as jnp
from jax import lax
from jax.experimental import pallas as pl
from jax.experimental.pallas import tpu as pltpu


LANE = 128  # TPU lane width; each packed projection is padded to this.


# ---------------------------------------------------------------------------
# One-time setup helpers (NOT in the per-call hot path).
# ---------------------------------------------------------------------------
def pack_qkv_params(wq, bq, wk, bk, wv, bv):
    """Pack wq|wk|wv -> (E, 3*LANE) and bq|bk|bv -> (1, 3*LANE), each
    projection zero-padded from H to LANE columns.  Call ONCE at setup."""
    E, H = np.asarray(wq).shape
    assert H <= LANE, "per-head dim larger than a lane-group; tile instead"

    def pad_w(w):
        return np.pad(np.asarray(w, dtype=np.float32), ((0, 0), (0, LANE - H)))

    def pad_b(b):
        return np.pad(np.asarray(b, dtype=np.float32), (0, LANE - H))

    w_packed = np.concatenate([pad_w(wq), pad_w(wk), pad_w(wv)], axis=1)
    b_packed = np.concatenate([pad_b(bq), pad_b(bk), pad_b(bv)]).reshape(1, 3 * LANE)
    return jnp.asarray(w_packed), jnp.asarray(b_packed)


def make_mask_bias(batch, seq):
    """Additive mask for the folded (B*T, B*T) score matrix: 0 where the
    column is a valid (same-batch, non-future) key, -1e30 otherwise.
    Built ONCE with numpy at setup time."""
    n = batch * seq
    r = np.arange(n)
    masked_out = (r[None, :] > r[:, None]) | ((r[None, :] // seq) != (r[:, None] // seq))
    # Large finite negative (not -inf) keeps the kernel NaN-safe; note that a
    # fully-masked row (never the case here: the diagonal is always valid)
    # would produce a uniform distribution rather than zeros.
    return jnp.asarray(np.where(masked_out, -1e30, 0.0).astype(np.float32))


# ---------------------------------------------------------------------------
# Kernel.
# ---------------------------------------------------------------------------
def _self_attention_kernel(x_ref, w_ref, b_ref, mask_ref, o_ref, *, h_dim):
    # x_ref:    (B*T, E)
    # w_ref:    (E, 3*LANE)   q|k|v, each zero-padded H -> LANE
    # b_ref:    (1, 3*LANE)
    # mask_ref: (B*T, B*T)    additive bias (0 / -1e30)
    # o_ref:    (B*T, LANE)   only the first h_dim columns are meaningful
    x = x_ref[...]

    # Fused q/k/v projection: one MXU push.
    qkv = jnp.dot(x, w_ref[...], preferred_element_type=jnp.float32) + b_ref[...]
    q = qkv[:, 0 * LANE:1 * LANE]          # (B*T, LANE), lane-aligned slice
    k = qkv[:, 1 * LANE:2 * LANE]
    v = qkv[:, 2 * LANE:3 * LANE]

    scale = 1.0 / math.sqrt(h_dim)

    # scores[r, c] = <q_r, k_c> / sqrt(H); the K transpose is folded into the
    # MXU contraction (contract last dim of both operands) -- no XLU vxpose.
    # Zero-padded columns of q/k contribute exactly 0 to the contraction.
    scores = lax.dot_general(
        q, k,
        dimension_numbers=(((1,), (1,)), ((), ())),
        preferred_element_type=jnp.float32) * scale          # (B*T, B*T)

    # Static causal + block-diagonal(batch) mask: a single vadd.
    scores = scores + mask_ref[...]

    # Numerically-stable softmax along the last axis.  Masked entries exp to
    # exactly 0; the diagonal is always valid so the denominator is >= 1.
    m = jnp.max(scores, axis=-1, keepdims=True)
    p = jnp.exp(scores - m)
    denom = jnp.sum(p, axis=-1, keepdims=True)
    weight = p * pl.reciprocal(denom, approx=True)           # EUP vrcp (free slot)

    # PV matmul; padded V columns are zero, so out[:, h_dim:] is exactly 0.
    out = jnp.dot(weight, v, preferred_element_type=jnp.float32)  # (B*T, LANE)
    o_ref[...] = out.astype(o_ref.dtype)                          # lane-dense store


# ---------------------------------------------------------------------------
# Per-call wrapper (hot path: reshape -> pallas_call -> slice/reshape).
# ---------------------------------------------------------------------------
def self_attention_pallas(x, w_packed, b_packed, mask_bias, *, h_dim):
    """x: (B, T, E); w_packed: (E, 3*LANE); b_packed: (1, 3*LANE);
    mask_bias: (B*T, B*T).  Returns (B, T, h_dim)."""
    B, T, E = x.shape
    x2 = x.reshape(B * T, E)

    kernel = functools.partial(_self_attention_kernel, h_dim=h_dim)

    out2 = pl.pallas_call(
        kernel,
        out_shape=jax.ShapeDtypeStruct((B * T, LANE), x.dtype),
        # No grid: single program, whole (tiny) arrays resident in VMEM.
        in_specs=[
            pl.BlockSpec(memory_space=pltpu.MemorySpace.VMEM),   # x2
            pl.BlockSpec(memory_space=pltpu.MemorySpace.VMEM),   # w_packed
            pl.BlockSpec(memory_space=pltpu.MemorySpace.VMEM),   # b_packed
            pl.BlockSpec(memory_space=pltpu.MemorySpace.VMEM),   # mask_bias
        ],
        out_specs=pl.BlockSpec(memory_space=pltpu.MemorySpace.VMEM),
    )(x2, w_packed, b_packed, mask_bias)

    return out2[:, :h_dim].reshape(B, T, h_dim)


# ---------------------------------------------------------------------------
# Pure-JAX reference matching the PyTorch forward.
# ---------------------------------------------------------------------------
def self_attention_ref(x, wq, bq, wk, bk, wv, bv):
    B, T, E = x.shape
    q = x @ wq + bq
    k = x @ wk + bk
    v = x @ wv + bv
    d_k = q.shape[-1]
    scores = jnp.einsum("btd,bsd->bts", q, k) / math.sqrt(d_k)
    mask = jnp.triu(jnp.ones((T, T), dtype=bool), k=1)
    scores = jnp.where(mask[None], -jnp.inf, scores)
    weight = jax.nn.softmax(scores, axis=-1)
    return jnp.einsum("bts,bsd->btd", weight, v)


if __name__ == "__main__":
    # Small shapes consistent with the module: B=2, T=8, E=32, H=16.
    B, T, E, H = 2, 8, 32, 16

    key = jax.random.PRNGKey(0)
    kx, kq, kbq, kk, kbk, kv, kbv = jax.random.split(key, 7)

    x = jax.random.normal(kx, (B, T, E), dtype=jnp.float32)

    # Deterministic parameter init (Linear-like scale); stored as (E, H) so
    # the kernel computes x @ W + b (equivalent to PyTorch's x @ W_pt.T + b).
    lim = 1.0 / math.sqrt(E)
    wq = jax.random.uniform(kq, (E, H), minval=-lim, maxval=lim, dtype=jnp.float32)
    bq = jax.random.uniform(kbq, (H,), minval=-lim, maxval=lim, dtype=jnp.float32)
    wk = jax.random.uniform(kk, (E, H), minval=-lim, maxval=lim, dtype=jnp.float32)
    bk = jax.random.uniform(kbk, (H,), minval=-lim, maxval=lim, dtype=jnp.float32)
    wv = jax.random.uniform(kv, (E, H), minval=-lim, maxval=lim, dtype=jnp.float32)
    bv = jax.random.uniform(kbv, (H,), minval=-lim, maxval=lim, dtype=jnp.float32)

    # --- one-time setup (hoisted out of the per-call hot path) -------------
    w_packed, b_packed = pack_qkv_params(wq, bq, wk, bk, wv, bv)
    mask_bias = make_mask_bias(B, T)

    attn = jax.jit(functools.partial(self_attention_pallas, h_dim=H))

    # --- run ----------------------------------------------------------------
    out = attn(x, w_packed, b_packed, mask_bias)
    out = jax.block_until_ready(out)

    ref = self_attention_ref(x, wq, bq, wk, bk, wv, bv)
    assert out.shape == (B, T, H), out.shape
    # Tolerance accommodates the EUP approximate reciprocal used for the
    # softmax normalization (rel. err ~1e-4).
    assert jnp.allclose(out, ref, atol=5e-3, rtol=5e-3), float(
        jnp.max(jnp.abs(out - ref)))

    # TODO(synk): for large B/T, switch to a flash-style q-tile x kv-tile grid
    # ("parallel" leading axis for v7x's 2 TCs, bf16 MXU operands, tiles sized
    # for 64 MiB VMEM); the monolithic (B*T, B*T) score slab does not scale.

    print("KERNEL_OK")
</pallas_src>

<mosaic_0001>
module attributes {stable_mosaic.version = 11 : i64} {
  func.func @_self_attention_kernel(%arg0: memref<16x32xf32, #tpu.memory_space<vmem>>, %arg1: memref<32x384xf32, #tpu.memory_space<vmem>>, %arg2: memref<1x384xf32, #tpu.memory_space<vmem>>, %arg3: memref<16x16xf32, #tpu.memory_space<vmem>>, %arg4: memref<16x128xf32, #tpu.memory_space<vmem>>) attributes {dimension_semantics = [], scalar_prefetch = 0 : i64, scratch_operands = 0 : i64, tpu.core_type = #tpu.core_type<tc>} {
    %c0 = arith.constant 0 : index
    %c0_0 = arith.constant 0 : index
    %0 = vector.load %arg0[%c0, %c0_0] : memref<16x32xf32, #tpu.memory_space<vmem>>, vector<16x32xf32>
    %c0_1 = arith.constant 0 : index
    %c0_2 = arith.constant 0 : index
    %1 = vector.load %arg1[%c0_1, %c0_2] : memref<32x384xf32, #tpu.memory_space<vmem>>, vector<32x384xf32>
    %cst = arith.constant dense<0.000000e+00> : vector<16x384xf32>
    %2 = tpu.matmul %0, %1, %cst {dimension_numbers = #tpu.dot_dimension_numbers<[1], [0], [0], [1], [0, 0, 1, 1], [], []>} : vector<16x32xf32>, vector<32x384xf32>, vector<16x384xf32> -> vector<16x384xf32>
    %c0_3 = arith.constant 0 : index
    %c0_4 = arith.constant 0 : index
    %3 = vector.load %arg2[%c0_3, %c0_4] : memref<1x384xf32, #tpu.memory_space<vmem>>, vector<1x384xf32>
    %4 = vector.broadcast %3 : vector<1x384xf32> to vector<16x384xf32>
    %5 = arith.addf %2, %4 : vector<16x384xf32>
    %6 = vector.extract_strided_slice %5 {offsets = [0, 0], sizes = [16, 128], strides = [1, 1]} : vector<16x384xf32> to vector<16x128xf32>
    %7 = vector.extract_strided_slice %5 {offsets = [0, 128], sizes = [16, 128], strides = [1, 1]} : vector<16x384xf32> to vector<16x128xf32>
    %8 = vector.extract_strided_slice %5 {offsets = [0, 256], sizes = [16, 128], strides = [1, 1]} : vector<16x384xf32> to vector<16x128xf32>
    %cst_5 = arith.constant dense<0.000000e+00> : vector<16x16xf32>
    %9 = tpu.matmul %6, %7, %cst_5 {dimension_numbers = #tpu.dot_dimension_numbers<[1], [1], [0], [0], [0, 0, 1, 0], [], []>} : vector<16x128xf32>, vector<16x128xf32>, vector<16x16xf32> -> vector<16x16xf32>
    %cst_6 = arith.constant 2.500000e-01 : f32
    %10 = vector.broadcast %cst_6 : f32 to vector<16x16xf32>
    %11 = arith.mulf %9, %10 : vector<16x16xf32>
    %c0_7 = arith.constant 0 : index
    %c0_8 = arith.constant 0 : index
    %12 = vector.load %arg3[%c0_7, %c0_8] : memref<16x16xf32, #tpu.memory_space<vmem>>, vector<16x16xf32>
    %13 = arith.addf %11, %12 : vector<16x16xf32>
    %cst_9 = arith.constant dense<0xFF800000> : vector<16xf32>
    %14 = vector.multi_reduction <maximumf>, %13, %cst_9 [1] : vector<16x16xf32> to vector<16xf32>
    %15 = vector.shape_cast %14 : vector<16xf32> to vector<16x1xf32>
    %16 = vector.broadcast %15 : vector<16x1xf32> to vector<16x16xf32>
    %17 = arith.subf %13, %16 : vector<16x16xf32>
    %18 = math.exp %17 : vector<16x16xf32>
    %cst_10 = arith.constant dense<0.000000e+00> : vector<16xf32>
    %19 = vector.multi_reduction <add>, %18, %cst_10 [1] : vector<16x16xf32> to vector<16xf32>
    %20 = vector.shape_cast %19 : vector<16xf32> to vector<16x1xf32>
    %21 = tpu.reciprocal %20 {approx = true} : vector<16x1xf32> -> vector<16x1xf32>
    %22 = vector.broadcast %21 : vector<16x1xf32> to vector<16x16xf32>
    %23 = arith.mulf %18, %22 : vector<16x16xf32>
    %cst_11 = arith.constant dense<0.000000e+00> : vector<16x128xf32>
    %24 = tpu.matmul %23, %8, %cst_11 {dimension_numbers = #tpu.dot_dimension_numbers<[1], [0], [0], [1], [0, 0, 1, 1], [], []>} : vector<16x16xf32>, vector<16x128xf32>, vector<16x128xf32> -> vector<16x128xf32>
    %c0_12 = arith.constant 0 : index
    %c0_13 = arith.constant 0 : index
    %25 = vector.load %arg4[%c0_12, %c0_13] : memref<16x128xf32, #tpu.memory_space<vmem>>, vector<16x128xf32>
    tpu.vector_store %arg4[%c0_12, %c0_13], %24 {strides = array<i32>} : memref<16x128xf32, #tpu.memory_space<vmem>>, vector<16x128xf32>,
    return
  }
}

</mosaic_0001>

<llo_original>
// kernel: self_attention_pallas.1
$region0: #{self_attention_pallas.1}
  #allocation0 [shape = 'u32[]', space=smem, size = 0x4, offset = 0x4, fixed_abs, tag = 'smem constant byte address 0x4 - core index']
  #allocation1 [shape = 'u32[72,128]{1,0:T(1,128)}', space=vmem, size = 0x9000, scoped, tag = 'internal scratch']
  %s0 = inlined_call_operand.hbm [shape: f32[16,32], index: 0, kind: input, shape index: {}]
  %s1 = inlined_call_operand.hbm [shape: f32[32,384], index: 1, kind: input, shape index: {}]
  %s2 = inlined_call_operand.hbm [shape: f32[1,384], index: 2, kind: input, shape index: {}]
  %s3 = inlined_call_operand.hbm [shape: f32[16,16], index: 3, kind: input, shape index: {}]
  %s4 = inlined_call_operand.vmem [shape: f32[16,128], index: 4, kind: output, shape index: {}]
  %s5 = sld [smem:[#allocation0]]
  $region42: #{self_attention_pallas.1} parent=0
    _
  %s7 = ssub.s32 1, %s5
  %s8 = scalar_select 0, %s7, %s5
  $region1: #{self_attention_pallas.1} parent=0
    #allocation2 [shape = 'u8[8192]{0}', space=vmem, size = 0x2000, scoped, tag = 'input window, operand 0, single buffered']
    #allocation3 [shape = 's32[1]{0}', space=sflag, size = 0x4, scoped, tag = 'scoped memory for self_attention_pallas.1']
    #allocation4 [shape = 'u8[49152]{0}', space=vmem, size = 0xc000, scoped, tag = 'input window, operand 1, single buffered']
    #allocation5 [shape = 's32[1]{0}', space=sflag, size = 0x4, scoped, tag = 'scoped memory for self_attention_pallas.1']
    #allocation6 [shape = 'u8[1536]{0}', space=vmem, size = 0x800, scoped, tag = 'input window, operand 2, single buffered']
    #allocation7 [shape = 'u8[8192]{0}', space=vmem, size = 0x2000, scoped, tag = 'input window, operand 3, single buffered']
    #allocation8 [shape = 's32[1]{0}', space=sflag, size = 0x4, scoped, tag = 'scoped memory for self_attention_pallas.1']
    %9 = vsyncpa [#allocation3], 0
    %10 = vsyncpa [#allocation5], 0
    %11 = vsyncpa [#allocation8], 0
    // Predicated region
    $region2: #{self_attention_pallas.1} parent=1 // pred_check
      _
    $region3: #{self_attention_pallas.1} parent=1 // pred_check_branch
      %13 = sbr.rel (0) target = $region5
    $region4: #{self_attention_pallas.1} parent=1 // pred_region
      %15 = vsyncadd [#allocation3], 0
      %s16 = sshll.u32 %s0, 4
      %s17 = int_to_ptr.hbm [resolvable:$true] %s16
      %s18 = sshll.u32 [#allocation2], 4
      %s19 = int_to_ptr.vmem [resolvable:$true] %s18
      %24 = dma.hbm_to_vmem [thread:$0]  %s17, 256, %s19, [#allocation3], 128, 128, 8
    $region5: #{self_attention_pallas.1} parent=1 // pred_fallthru
      _
    // Predicated region
    $region6: #{self_attention_pallas.1} parent=1 // pred_check
      _
    $region7: #{self_attention_pallas.1} parent=1 // pred_check_branch
      %26 = sbr.rel (0) target = $region9
    $region8: #{self_attention_pallas.1} parent=1 // pred_region
      %28 = vsyncadd [#allocation5], 0
      %s29 = sshll.u32 %s1, 4
      %s30 = int_to_ptr.hbm [resolvable:$true] %s29
      %s31 = sshll.u32 [#allocation4], 4
      %s32 = int_to_ptr.vmem [resolvable:$true] %s31
      %37 = dma.hbm_to_vmem [thread:$0]  %s30, 1536, %s32, [#allocation5], 384, 384, 24
    $region9: #{self_attention_pallas.1} parent=1 // pred_fallthru
      _
    // Predicated region
    $region10: #{self_attention_pallas.1} parent=1 // pred_check
      _
    $region11: #{self_attention_pallas.1} parent=1 // pred_check_branch
      %39 = sbr.rel (0) target = $region13
    $region12: #{self_attention_pallas.1} parent=1 // pred_region
      %41 = vsyncadd [#allocation5], 0
      %s43 = sshll.u32 %s2, 4
      %s44 = int_to_ptr.hbm [resolvable:$true] %s43
      %s45 = sshll.u32 [#allocation6], 4
      %s46 = int_to_ptr.vmem [resolvable:$true] %s45
      %48 = dma.hbm_to_vmem [thread:$0]  %s44, 48, %s46, [#allocation5]
    $region13: #{self_attention_pallas.1} parent=1 // pred_fallthru
      _
    // Predicated region
    $region14: #{self_attention_pallas.1} parent=1 // pred_check
      _
    $region15: #{self_attention_pallas.1} parent=1 // pred_check_branch
      %50 = sbr.rel (0) target = $region17
    $region16: #{self_attention_pallas.1} parent=1 // pred_region
      %52 = vsyncadd [#allocation8], 0
      %s53 = sshll.u32 %s3, 4
      %s54 = int_to_ptr.hbm [resolvable:$true] %s53
      %s55 = sshll.u32 [#allocation7], 4
      %s56 = int_to_ptr.vmem [resolvable:$true] %s55
      %61 = dma.hbm_to_vmem [thread:$0]  %s54, 256, %s56, [#allocation8], 128, 128, 8
    $region17: #{self_attention_pallas.1} parent=1 // pred_fallthru
      _
    // Predicated region
    $region18: #{self_attention_pallas.1} parent=1 // pred_check
      _
    $region19: #{self_attention_pallas.1} parent=1 // pred_check_branch
      %63 = sbr.rel (0) target = $region21
    $region20: #{self_attention_pallas.1} parent=1 // pred_region
      %65 = dma.done [#allocation3], 256
    $region21: #{self_attention_pallas.1} parent=1 // pred_fallthru
      _
    // Predicated region
    $region22: #{self_attention_pallas.1} parent=1 // pred_check
      _
    $region23: #{self_attention_pallas.1} parent=1 // pred_check_branch
      %67 = sbr.rel (0) target = $region25
    $region24: #{self_attention_pallas.1} parent=1 // pred_region
      %69 = dma.done [#allocation5], 1536
    $region25: #{self_attention_pallas.1} parent=1 // pred_fallthru
      _
    // Predicated region
    $region26: #{self_attention_pallas.1} parent=1 // pred_check
      _
    $region27: #{self_attention_pallas.1} parent=1 // pred_check_branch
      %71 = sbr.rel (0) target = $region29
    $region28: #{self_attention_pallas.1} parent=1 // pred_region
      %73 = dma.done [#allocation5], 48
    $region29: #{self_attention_pallas.1} parent=1 // pred_fallthru
      _
    // Predicated region
    $region30: #{self_attention_pallas.1} parent=1 // pred_check
      _
    $region31: #{self_attention_pallas.1} parent=1 // pred_check_branch
      %75 = sbr.rel (0) target = $region33
    $region32: #{self_attention_pallas.1} parent=1 // pred_region
      %77 = dma.done [#allocation8], 256
    $region33: #{self_attention_pallas.1} parent=1 // pred_fallthru
      _
    %v78 = vld [vmem:[#allocation2] sm:$0xff]
    %v79 = vld [vmem:[#allocation2 + $0x8] sm:$0xff]
    %v80 = vld [vmem:[#allocation4] sm:$0xff]
    %v81 = vld [vmem:[#allocation4 + $0x8] sm:$0xff]
    %v82 = vld [vmem:[#allocation4 + $0x10] sm:$0xff]
    %v83 = vld [vmem:[#allocation4 + $0x18] sm:$0xff]
    %v84 = vld [vmem:[#allocation4 + $0x20] sm:$0xff]
    %v85 = vld [vmem:[#allocation4 + $0x28] sm:$0xff]
    %v86 = vld [vmem:[#allocation4 + $0x30] sm:$0xff]
    %v87 = vld [vmem:[#allocation4 + $0x38] sm:$0xff]
    %v88 = vld [vmem:[#allocation4 + $0x40] sm:$0xff]
    %v89 = vld [vmem:[#allocation4 + $0x48] sm:$0xff]
    %v90 = vld [vmem:[#allocation4 + $0x50] sm:$0xff]
    %v91 = vld [vmem:[#allocation4 + $0x58] sm:$0xff]
    %v92 = vld [vmem:[#allocation6] sm:$0x7]
    %v94 = vperm.slane %v92, 0
    %v95 = vperm.slane %v92, 1
    %v96 = vperm.slane %v92, 2
    %vm100 = vcmask 261120
    %v102 = vsel %vm100, %v78, 0
    %v105 = vsel %vm100, %v79, 0
    %107 = vmatpush.msra.mxu0 0.0
    %108 = vmatpush.msra.mxu0 0.0
    %109 = vmatpush.msra.mxu0 0.0
    %110 = vmatpush.msra.mxu0 0.0
    %111 = vmatpush.msra.mxu0 0.0
    %112 = vmatpush.msra.mxu0 0.0
    %113 = vmatpush.msra.mxu0 0.0
    %114 = vmatpush.msra.mxu0 0.0
    %115 = vmatpush.msra.mxu0 0.0
    %116 = vmatpush.msra.mxu0 0.0
    %117 = vmatpush.msra.mxu0 0.0
    %118 = vmatpush.msra.mxu0 0.0
    %119 = vmatpush.msra.mxu0 %v89
    %120 = vmatpush.msra.mxu0 %v86
    %121 = vmatpush.msra.mxu0 %v83
    %122 = vmatpush.msra.mxu0 %v80
    %123 = vmatmul.f32.gmra.mxu0 %v102
    %v124 = vpop.f32.mrf.mxu0
    %v125 = vadd.f32 %v94, %v124
    %126 = vmatmul.f32.gmra.mxu0 %v105
    %v127 = vpop.f32.mrf.mxu0
    %v128 = vadd.f32 %v94, %v127
    %129 = vdwg.mxu0
    %130 = vmatpush.msra.mxu0 0.0
    %131 = vmatpush.msra.mxu0 0.0
    %132 = vmatpush.msra.mxu0 0.0
    %133 = vmatpush.msra.mxu0 0.0
    %134 = vmatpush.msra.mxu0 0.0
    %135 = vmatpush.msra.mxu0 0.0
    %136 = vmatpush.msra.mxu0 0.0
    %137 = vmatpush.msra.mxu0 0.0
    %138 = vmatpush.msra.mxu0 0.0
    %139 = vmatpush.msra.mxu0 0.0
    %140 = vmatpush.msra.mxu0 0.0
    %141 = vmatpush.msra.mxu0 0.0
    %142 = vmatpush.msra.mxu0 %v90
    %143 = vmatpush.msra.mxu0 %v87
    %144 = vmatpush.msra.mxu0 %v84
    %145 = vmatpush.msra.mxu0 %v81
    %146 = vmatmul.f32.gmra.mxu0 %v102
    %v147 = vpop.f32.mrf.mxu0
    %v148 = vadd.f32 %v95, %v147
    %149 = vmatmul.f32.gmra.mxu0 %v105
    %v150 = vpop.f32.mrf.mxu0
    %v151 = vadd.f32 %v95, %v150
    %152 = vdwg.mxu0
    %153 = vmatpush.msra.mxu0 0.0
    %154 = vmatpush.msra.mxu0 0.0
    %155 = vmatpush.msra.mxu0 0.0
    %156 = vmatpush.msra.mxu0 0.0
    %157 = vmatpush.msra.mxu0 0.0
    %158 = vmatpush.msra.mxu0 0.0
    %159 = vmatpush.msra.mxu0 0.0
    %160 = vmatpush.msra.mxu0 0.0
    %161 = vmatpush.msra.mxu0 0.0
    %162 = vmatpush.msra.mxu0 0.0
    %163 = vmatpush.msra.mxu0 0.0
    %164 = vmatpush.msra.mxu0 0.0
    %165 = vmatpush.msra.mxu0 %v91
    %166 = vmatpush.msra.mxu0 %v88
    %167 = vmatpush.msra.mxu0 %v85
    %168 = vmatpush.msra.mxu0 %v82
    %169 = vmatmul.f32.gmra.mxu0 %v102
    %v170 = vpop.f32.mrf.mxu0
    %v171 = vadd.f32 %v96, %v170
    %172 = vmatmul.f32.gmra.mxu0 %v105
    %v173 = vpop.f32.mrf.mxu0
    %v174 = vadd.f32 %v96, %v173
    %175 = vdwg.mxu0
    %176 = vmatpush.xpose.msra.mxu0 0.0
    %177 = vmatpush.xpose.msra.mxu0 0.0
    %178 = vmatpush.xpose.msra.mxu0 0.0
    %179 = vmatpush.xpose.msra.mxu0 0.0
    %180 = vmatpush.xpose.msra.mxu0 0.0
    %181 = vmatpush.xpose.msra.mxu0 0.0
    %182 = vmatpush.xpose.msra.mxu0 0.0
    %183 = vmatpush.xpose.msra.mxu0 0.0
    %184 = vmatpush.xpose.msra.mxu0 0.0
    %185 = vmatpush.xpose.msra.mxu0 0.0
    %186 = vmatpush.xpose.msra.mxu0 0.0
    %187 = vmatpush.xpose.msra.mxu0 0.0
    %188 = vmatpush.xpose.msra.mxu0 0.0
    %189 = vmatpush.xpose.msra.mxu0 0.0
    %190 = vmatpush.xpose.msra.mxu0 %v151
    %191 = vmatpush.xpose.msra.mxu0 %v148
    %192 = vmatmul.f32.gmra.mxu0 %v125
    %v193 = vpop.f32.mrf.mxu0
    %v194 = vadd.f32 0.0, %v193
    %195 = vmatmul.f32.gmra.mxu0 %v128
    %v196 = vpop.f32.mrf.mxu0
    %v197 = vadd.f32 0.0, %v196
    %198 = vdwg.mxu0
    %v199 = vmul.f32 %v194, 0.25
    %v200 = vmul.f32 %v197, 0.25
    %v201 = vld [vmem:[#allocation7] sm:$0xff]
    %v202 = vld [vmem:[#allocation7 + $0x8] sm:$0xff]
    %v203 = vadd.f32 %v199, %v201
    %v204 = vadd.f32 %v200, %v202
    %vm205 = vcmask 130048
    %v206 = vsel %vm205, %v203, -inf
    %207 = vmax.xlane.f32.xlu0 %v206
    %v208 = vpop.xlane.xlu0 %207
    %v209 = vsel %vm205, %v204, -inf
    %210 = vmax.xlane.f32.xlu0 %v209
    %v211 = vpop.xlane.xlu0 %210
    %v212 = vsub.f32 %v203, %v208
    %v213 = vsub.f32 %v204, %v211
    %v214 = vmul.f32 %v212, 1.442695
    %v215 = vpow.pop %v214
    %v216 = vmul.f32 %v213, 1.442695
    %v217 = vpow.pop %v216
    %v218 = vsel %vm205, %v215, 0.0
    %219 = vadd.xlane.f32.xlu0 %v218
    %v220 = vpop.xlane.xlu0 %219
    %v221 = vsel %vm205, %v217, 0.0
    %222 = vadd.xlane.f32.xlu0 %v221
    %v223 = vpop.xlane.xlu0 %222
    %v224 = vrcp.pop %v220
    %v225 = vrcp.pop %v223
    %v226 = vmul.f32 %v215, %v224
    %v227 = vmul.f32 %v217, %v225
    %v229 = vsel %vm205, %v226, 0
    %v232 = vsel %vm205, %v227, 0
    %234 = vmatpush.msra.mxu0 0.0
    %235 = vmatpush.msra.mxu0 0.0
    %236 = vmatpush.msra.mxu0 0.0
    %237 = vmatpush.msra.mxu0 0.0
    %238 = vmatpush.msra.mxu0 0.0
    %239 = vmatpush.msra.mxu0 0.0
    %240 = vmatpush.msra.mxu0 0.0
    %241 = vmatpush.msra.mxu0 0.0
    %242 = vmatpush.msra.mxu0 0.0
    %243 = vmatpush.msra.mxu0 0.0
    %244 = vmatpush.msra.mxu0 0.0
    %245 = vmatpush.msra.mxu0 0.0
    %246 = vmatpush.msra.mxu0 0.0
    %247 = vmatpush.msra.mxu0 0.0
    %248 = vmatpush.msra.mxu0 %v174
    %249 = vmatpush.msra.mxu0 %v171
    %250 = vmatmul.f32.gmra.mxu0 %v229
    %v251 = vpop.f32.mrf.mxu0
    %v252 = vadd.f32 0.0, %v251
    %253 = vmatmul.f32.gmra.mxu0 %v232
    %v254 = vpop.f32.mrf.mxu0
    %v255 = vadd.f32 0.0, %v254
    %256 = vdwg.mxu0
    %257 = vst [vmem:[%s4] sm:$0xff] %v252
    %258 = vst [vmem:[%s4 + $0x8] sm:$0xff] %v255
    // Predicated region
    $region34: #{self_attention_pallas.1} parent=1 // pred_check
      _
    $region35: #{self_attention_pallas.1} parent=1 // pred_check_branch
      %260 = sbr.rel (0) target = $region37
    $region36: #{self_attention_pallas.1} parent=1 // pred_region
      _
    $region37: #{self_attention_pallas.1} parent=1 // pred_fallthru
      _
    // Predicated region
    $region38: #{self_attention_pallas.1} parent=1 // pred_check
      _
    $region39: #{self_attention_pallas.1} parent=1 // pred_check_branch
      %262 = sbr.rel (0) target = $region41
    $region40: #{self_attention_pallas.1} parent=1 // pred_region
      _
    $region41: #{self_attention_pallas.1} parent=1 // pred_fallthru
      _
    %263 = vsyncpa [#allocation3], 1
    %264 = vsyncpa [#allocation5], 1
    %265 = vsyncpa [#allocation8], 1

</llo_original>
